<compile_context>
chip_gen: v7x
topology: tpu7x:2x2x1
jax: 0.10.0
libtpu: 0.0.40
codegen_flags: <defaults>
</compile_context>

<pallas_src>
import functools

import jax
import jax.numpy as jnp
import numpy as np
from jax import lax
from jax.experimental import pallas as pl
from jax.experimental.pallas import tpu as pltpu


def spa_kernel(x_ref, o_ref, s_ref, *, k, n, c, bb, c_chunk, unroll):
    """x_ref: (bb, C, N)  o_ref: (bb, C, k)  s_ref: (bb, k, N) scratch (x.dtype)."""
    # ---- 1) powsum[b, n] = sum_c x[b, c, n]^2  (f32 accumulation) ------------
    if c_chunk >= c:
        xf = x_ref[...].astype(jnp.float32)
        ps0 = jnp.sum(xf * xf, axis=1, keepdims=True)              # (bb, 1, N)
    else:
        num_chunks = c // c_chunk                                   # exact by construction

        def chunk_body(ci, acc):
            start = pl.multiple_of(ci * c_chunk, c_chunk)
            xc = x_ref[:, pl.ds(start, c_chunk), :].astype(jnp.float32)
            return acc + jnp.sum(xc * xc, axis=1, keepdims=True)

        ps0 = lax.fori_loop(0, num_chunks, chunk_body,
                            jnp.zeros((bb, 1, n), jnp.float32))

    # ---- 2) k-step argmax selection (vectorized over the bb batches) ---------
    lane_idx = lax.broadcasted_iota(jnp.int32, (1, 1, n), 2)

    def body(i, ps):
        m = jnp.max(ps, axis=-1, keepdims=True)                     # (bb, 1, 1)
        # smallest-index tie break matches lax.top_k / torch.topk ordering
        j = jnp.min(jnp.where(ps == m, lane_idx, n), axis=-1, keepdims=True)
        sel = lane_idx == j                                          # (bb, 1, N) one-hot
        # NOTE(contract): a NaN in powsum makes `ps == m` all-false -> all-zero
        # one-hot row (zero output row) instead of top_k's NaN-first behavior.
        # The store is off the serial dependency chain; one store per step.
        s_ref[:, pl.ds(i, 1), :] = sel.astype(s_ref.dtype)
        return jnp.where(sel, -jnp.inf, ps)                          # mask for next step

    lax.fori_loop(0, k, body, ps0, unroll=unroll)

    # ---- 3) gather with one batched MXU matmul (native dtype, exact) ---------
    # Same structure as the reference flash pattern 'bqd,bkd->bqk': x is the
    # canonical LHS (contraction on its lane dim), only the small S operand is
    # in the transposed position -> no XLU transpose of the (C, N) slab.
    out = jnp.einsum('bcn,bkn->bck', x_ref[...], s_ref[...],
                     preferred_element_type=jnp.float32)
    o_ref[...] = out.astype(o_ref.dtype)


def _padded_tile_bytes(rows, cols, itemsize):
    """Conservative VMEM footprint of a (rows, cols) tile after (8*pack, 128) padding."""
    row_tile = 8 * max(1, 4 // itemsize)          # f32: 8, bf16: 16, int8: 32
    prows = pl.cdiv(rows, row_tile) * row_tile
    pcols = pl.cdiv(cols, 128) * 128
    return prows * pcols * itemsize


def _vmem_need(bb, C, N, k, itemsize):
    in_bytes = 2 * bb * _padded_tile_bytes(C, N, itemsize)    # double-buffered input
    out_bytes = 2 * bb * _padded_tile_bytes(C, k, itemsize)   # double-buffered output
    s_bytes = bb * _padded_tile_bytes(k, N, itemsize)         # selection scratch (single)
    return in_bytes + out_bytes + s_bytes


def _choose_c_chunk(C):
    if C <= 256:
        return C
    for cand in (256, 128, 64, 32, 16, 8):
        if C % cand == 0:
            return cand
    return C  # odd large C: fall back to single-shot (correct, more vreg pressure)


def spa_block(x_nchw, k, *, adaptive=False, reduction=16):
    """Pallas implementation of SPABlock.forward (mode='pow', learning=False,
    return_info=False).  Returns [B, k, C]."""
    B, C, H, W = x_nchw.shape
    N = H * W
    if adaptive:
        k = max(N // reduction, 1)
    if not (1 <= k <= N):
        raise ValueError(f"k={k} must be in [1, N={N}]")

    x_bcn = x_nchw.reshape(B, C, N)               # free reshape, native layout
    dtype = x_bcn.dtype
    itemsize = jnp.dtype(dtype).itemsize

    # --- per-core VMEM budget (v7x: 64 MiB/TC; v5e/v6e: 128 MiB) --------------
    try:
        vmem_cap = int(pltpu.get_tpu_info().vmem_capacity_bytes)
    except Exception:
        vmem_cap = 64 << 20                       # conservative v7x per-TC default
    margin = 4 << 20
    budget = int(0.70 * vmem_cap)

    # --- pack bb batches per grid step: largest divisor of B that fits --------
    per_batch_in = _padded_tile_bytes(C, N, itemsize)
    bb = 0
    for d in range(1, min(B, 16) + 1):
        if B % d:
            continue
        if (_vmem_need(d, C, N, k, itemsize) + margin <= budget
                and d * per_batch_in <= (16 << 20)):
            bb = d
    if bb == 0:
        # TODO(synk): add a C-chunked second ("arbitrary") grid axis with powsum
        # accumulation + per-chunk gather once a single (C, N) slab no longer
        # fits per-core VMEM.
        raise ValueError(
            f"SPABlock slab (C={C}, N={N}, dtype={dtype}) exceeds the per-core "
            f"VMEM budget ({budget >> 20} MiB) even with one batch per step.")

    need = _vmem_need(bb, C, N, k, itemsize)
    vmem_limit = int(min(max(need + margin, 16 << 20), budget))

    # Selection-loop unroll: full for small k, partial for mid-size k so the
    # scheduler can overlap the off-chain S store with the next step's reduce.
    if k <= 16:
        unroll = True
    elif k % 8 == 0:
        unroll = 8
    elif k % 4 == 0:
        unroll = 4
    else:
        unroll = False

    kernel = functools.partial(spa_kernel, k=k, n=N, c=C, bb=bb,
                               c_chunk=_choose_c_chunk(C), unroll=unroll)

    out_bck = pl.pallas_call(
        kernel,
        out_shape=jax.ShapeDtypeStruct((B, C, k), dtype),
        grid_spec=pltpu.PrefetchScalarGridSpec(
            num_scalar_prefetch=0,
            grid=(B // bb,),
            in_specs=[pl.BlockSpec((bb, C, N), lambda g: (g, 0, 0))],
            out_specs=pl.BlockSpec((bb, C, k), lambda g: (g, 0, 0)),
            scratch_shapes=[pltpu.VMEM((bb, k, N), dtype)],
        ),
        compiler_params=pltpu.CompilerParams(
            # Batch groups are independent -> shard across TensorCores on v7x;
            # harmless no-op on single-TC v5e/v6e.
            dimension_semantics=("parallel",),
            vmem_limit_bytes=vmem_limit,
        ),
    )(x_bcn)

    # Tiny [B, C, k] -> [B, k, C] transpose in the wrapper (k*C per batch).
    return jnp.transpose(out_bck, (0, 2, 1))


def spa_block_ref(x_nchw, k):
    """Pure-JAX reference mirroring the PyTorch forward."""
    B, C, H, W = x_nchw.shape
    x = jnp.transpose(x_nchw.reshape(B, C, -1), (0, 2, 1))   # [B, N, C]
    ps = jnp.sum(x * x, axis=2)                               # [B, N]
    _, idx = lax.top_k(ps, k)                                 # [B, k]
    return jnp.take_along_axis(x, idx[..., None], axis=1)     # [B, k, C]


if __name__ == "__main__":
    # SPABlock(in_channels=4, k=8, adaptive=False, learning=False, mode='pow')
    # TODO(synk): learning=True (k as a trainable nn.Parameter) has no
    # static-shape Pallas equivalent; only the fixed-k path is implemented.
    B, C, H, W = 2, 4, 16, 16
    K = 8

    key = jax.random.PRNGKey(0)
    x = jax.random.normal(key, (B, C, H, W), dtype=jnp.float32)

    out = jax.block_until_ready(spa_block(x, K))

    ref = spa_block_ref(x, K)
    np.testing.assert_allclose(np.asarray(out), np.asarray(ref), rtol=1e-6, atol=1e-6)

    print("KERNEL_OK")
</pallas_src>

<mosaic_0001>
module attributes {stable_mosaic.version = 11 : i64} {
  func.func @spa_kernel(%arg0: i32, %arg1: memref<2x4x256xf32, #tpu.memory_space<vmem>>, %arg2: memref<2x4x8xf32, #tpu.memory_space<vmem>>, %arg3: memref<2x8x256xf32, #tpu.memory_space<vmem>>) attributes {dimension_semantics = [#tpu.dimension_semantics<parallel>], iteration_bounds = array<i64: 1>, scalar_prefetch = 0 : i64, scratch_operands = 1 : i64, tpu.core_type = #tpu.core_type<tc>, window_params = [{transform_indices = @transform_0, window_bounds = array<i64: 2, 4, 256>}, {transform_indices = @transform_1, window_bounds = array<i64: 2, 4, 8>}]} {
    %c0 = arith.constant 0 : index
    %c0_0 = arith.constant 0 : index
    %c0_1 = arith.constant 0 : index
    %0 = vector.load %arg1[%c0, %c0_0, %c0_1] : memref<2x4x256xf32, #tpu.memory_space<vmem>>, vector<2x4x256xf32>
    %1 = arith.mulf %0, %0 : vector<2x4x256xf32>
    %cst = arith.constant dense<0.000000e+00> : vector<2x256xf32>
    %2 = vector.multi_reduction <add>, %1, %cst [1] : vector<2x4x256xf32> to vector<2x256xf32>
    %3 = vector.shape_cast %2 : vector<2x256xf32> to vector<2x1x256xf32>
    %4 = tpu.iota {dimensions = array<i32: 2>} : vector<1x1x256xi32>
    %c0_i32 = arith.constant 0 : i32
    %cst_2 = arith.constant dense<0xFF800000> : vector<2x1xf32>
    %5 = vector.multi_reduction <maximumf>, %3, %cst_2 [2] : vector<2x1x256xf32> to vector<2x1xf32>
    %6 = vector.shape_cast %5 : vector<2x1xf32> to vector<2x1x1xf32>
    %7 = vector.broadcast %6 : vector<2x1x1xf32> to vector<2x1x256xf32>
    %8 = arith.cmpf oeq, %3, %7 : vector<2x1x256xf32>
    %c256_i32 = arith.constant 256 : i32
    %9 = vector.shape_cast %4 : vector<1x1x256xi32> to vector<1x1x256xi32>
    %10 = vector.broadcast %9 : vector<1x1x256xi32> to vector<2x1x256xi32>
    %11 = vector.broadcast %c256_i32 : i32 to vector<2x1x256xi32>
    %12 = arith.select %8, %10, %11 : vector<2x1x256xi1>, vector<2x1x256xi32>
    %cst_3 = arith.constant dense<2147483647> : vector<2x1xi32>
    %13 = vector.multi_reduction <minsi>, %12, %cst_3 [2] : vector<2x1x256xi32> to vector<2x1xi32>
    %14 = vector.shape_cast %13 : vector<2x1xi32> to vector<2x1x1xi32>
    %15 = vector.broadcast %4 : vector<1x1x256xi32> to vector<2x1x256xi32>
    %16 = vector.broadcast %14 : vector<2x1x1xi32> to vector<2x1x256xi32>
    %17 = arith.cmpi eq, %15, %16 : vector<2x1x256xi32>
    %18 = arith.extui %17 : vector<2x1x256xi1> to vector<2x1x256xi32>
    %19 = arith.sitofp %18 : vector<2x1x256xi32> to vector<2x1x256xf32>
    %c0_4 = arith.constant 0 : index
    %20 = arith.index_cast %c0_i32 : i32 to index
    %c0_5 = arith.constant 0 : index
    %21 = vector.load %arg3[%c0_4, %20, %c0_5] : memref<2x8x256xf32, #tpu.memory_space<vmem>>, vector<2x1x256xf32>
    tpu.vector_store %arg3[%c0_4, %20, %c0_5], %19 {strides = array<i32>} : memref<2x8x256xf32, #tpu.memory_space<vmem>>, vector<2x1x256xf32>,
    %cst_6 = arith.constant 0xFF800000 : f32
    %22 = vector.broadcast %cst_6 : f32 to vector<2x1x256xf32>
    %23 = arith.select %17, %22, %3 : vector<2x1x256xi1>, vector<2x1x256xf32>
    %c1_i32 = arith.constant 1 : i32
    %cst_7 = arith.constant dense<0xFF800000> : vector<2x1xf32>
    %24 = vector.multi_reduction <maximumf>, %23, %cst_7 [2] : vector<2x1x256xf32> to vector<2x1xf32>
    %25 = vector.shape_cast %24 : vector<2x1xf32> to vector<2x1x1xf32>
    %26 = vector.broadcast %25 : vector<2x1x1xf32> to vector<2x1x256xf32>
    %27 = arith.cmpf oeq, %23, %26 : vector<2x1x256xf32>
    %c256_i32_8 = arith.constant 256 : i32
    %28 = vector.shape_cast %4 : vector<1x1x256xi32> to vector<1x1x256xi32>
    %29 = vector.broadcast %28 : vector<1x1x256xi32> to vector<2x1x256xi32>
    %30 = vector.broadcast %c256_i32_8 : i32 to vector<2x1x256xi32>
    %31 = arith.select %27, %29, %30 : vector<2x1x256xi1>, vector<2x1x256xi32>
    %cst_9 = arith.constant dense<2147483647> : vector<2x1xi32>
    %32 = vector.multi_reduction <minsi>, %31, %cst_9 [2] : vector<2x1x256xi32> to vector<2x1xi32>
    %33 = vector.shape_cast %32 : vector<2x1xi32> to vector<2x1x1xi32>
    %34 = vector.broadcast %4 : vector<1x1x256xi32> to vector<2x1x256xi32>
    %35 = vector.broadcast %33 : vector<2x1x1xi32> to vector<2x1x256xi32>
    %36 = arith.cmpi eq, %34, %35 : vector<2x1x256xi32>
    %37 = arith.extui %36 : vector<2x1x256xi1> to vector<2x1x256xi32>
    %38 = arith.sitofp %37 : vector<2x1x256xi32> to vector<2x1x256xf32>
    %c0_10 = arith.constant 0 : index
    %39 = arith.index_cast %c1_i32 : i32 to index
    %c0_11 = arith.constant 0 : index
    %40 = vector.load %arg3[%c0_10, %39, %c0_11] : memref<2x8x256xf32, #tpu.memory_space<vmem>>, vector<2x1x256xf32>
    tpu.vector_store %arg3[%c0_10, %39, %c0_11], %38 {strides = array<i32>} : memref<2x8x256xf32, #tpu.memory_space<vmem>>, vector<2x1x256xf32>,
    %cst_12 = arith.constant 0xFF800000 : f32
    %41 = vector.broadcast %cst_12 : f32 to vector<2x1x256xf32>
    %42 = arith.select %36, %41, %23 : vector<2x1x256xi1>, vector<2x1x256xf32>
    %c2_i32 = arith.constant 2 : i32
    %cst_13 = arith.constant dense<0xFF800000> : vector<2x1xf32>
    %43 = vector.multi_reduction <maximumf>, %42, %cst_13 [2] : vector<2x1x256xf32> to vector<2x1xf32>
    %44 = vector.shape_cast %43 : vector<2x1xf32> to vector<2x1x1xf32>
    %45 = vector.broadcast %44 : vector<2x1x1xf32> to vector<2x1x256xf32>
    %46 = arith.cmpf oeq, %42, %45 : vector<2x1x256xf32>
    %c256_i32_14 = arith.constant 256 : i32
    %47 = vector.shape_cast %4 : vector<1x1x256xi32> to vector<1x1x256xi32>
    %48 = vector.broadcast %47 : vector<1x1x256xi32> to vector<2x1x256xi32>
    %49 = vector.broadcast %c256_i32_14 : i32 to vector<2x1x256xi32>
    %50 = arith.select %46, %48, %49 : vector<2x1x256xi1>, vector<2x1x256xi32>
    %cst_15 = arith.constant dense<2147483647> : vector<2x1xi32>
    %51 = vector.multi_reduction <minsi>, %50, %cst_15 [2] : vector<2x1x256xi32> to vector<2x1xi32>
    %52 = vector.shape_cast %51 : vector<2x1xi32> to vector<2x1x1xi32>
    %53 = vector.broadcast %4 : vector<1x1x256xi32> to vector<2x1x256xi32>
    %54 = vector.broadcast %52 : vector<2x1x1xi32> to vector<2x1x256xi32>
    %55 = arith.cmpi eq, %53, %54 : vector<2x1x256xi32>
    %56 = arith.extui %55 : vector<2x1x256xi1> to vector<2x1x256xi32>
    %57 = arith.sitofp %56 : vector<2x1x256xi32> to vector<2x1x256xf32>
    %c0_16 = arith.constant 0 : index
    %58 = arith.index_cast %c2_i32 : i32 to index
    %c0_17 = arith.constant 0 : index
    %59 = vector.load %arg3[%c0_16, %58, %c0_17] : memref<2x8x256xf32, #tpu.memory_space<vmem>>, vector<2x1x256xf32>
    tpu.vector_store %arg3[%c0_16, %58, %c0_17], %57 {strides = array<i32>} : memref<2x8x256xf32, #tpu.memory_space<vmem>>, vector<2x1x256xf32>,
    %cst_18 = arith.constant 0xFF800000 : f32
    %60 = vector.broadcast %cst_18 : f32 to vector<2x1x256xf32>
    %61 = arith.select %55, %60, %42 : vector<2x1x256xi1>, vector<2x1x256xf32>
    %c3_i32 = arith.constant 3 : i32
    %cst_19 = arith.constant dense<0xFF800000> : vector<2x1xf32>
    %62 = vector.multi_reduction <maximumf>, %61, %cst_19 [2] : vector<2x1x256xf32> to vector<2x1xf32>
    %63 = vector.shape_cast %62 : vector<2x1xf32> to vector<2x1x1xf32>
    %64 = vector.broadcast %63 : vector<2x1x1xf32> to vector<2x1x256xf32>
    %65 = arith.cmpf oeq, %61, %64 : vector<2x1x256xf32>
    %c256_i32_20 = arith.constant 256 : i32
    %66 = vector.shape_cast %4 : vector<1x1x256xi32> to vector<1x1x256xi32>
    %67 = vector.broadcast %66 : vector<1x1x256xi32> to vector<2x1x256xi32>
    %68 = vector.broadcast %c256_i32_20 : i32 to vector<2x1x256xi32>
    %69 = arith.select %65, %67, %68 : vector<2x1x256xi1>, vector<2x1x256xi32>
    %cst_21 = arith.constant dense<2147483647> : vector<2x1xi32>
    %70 = vector.multi_reduction <minsi>, %69, %cst_21 [2] : vector<2x1x256xi32> to vector<2x1xi32>
    %71 = vector.shape_cast %70 : vector<2x1xi32> to vector<2x1x1xi32>
    %72 = vector.broadcast %4 : vector<1x1x256xi32> to vector<2x1x256xi32>
    %73 = vector.broadcast %71 : vector<2x1x1xi32> to vector<2x1x256xi32>
    %74 = arith.cmpi eq, %72, %73 : vector<2x1x256xi32>
    %75 = arith.extui %74 : vector<2x1x256xi1> to vector<2x1x256xi32>
    %76 = arith.sitofp %75 : vector<2x1x256xi32> to vector<2x1x256xf32>
    %c0_22 = arith.constant 0 : index
    %77 = arith.index_cast %c3_i32 : i32 to index
    %c0_23 = arith.constant 0 : index
    %78 = vector.load %arg3[%c0_22, %77, %c0_23] : memref<2x8x256xf32, #tpu.memory_space<vmem>>, vector<2x1x256xf32>
    tpu.vector_store %arg3[%c0_22, %77, %c0_23], %76 {strides = array<i32>} : memref<2x8x256xf32, #tpu.memory_space<vmem>>, vector<2x1x256xf32>,
    %cst_24 = arith.constant 0xFF800000 : f32
    %79 = vector.broadcast %cst_24 : f32 to vector<2x1x256xf32>
    %80 = arith.select %74, %79, %61 : vector<2x1x256xi1>, vector<2x1x256xf32>
    %c4_i32 = arith.constant 4 : i32
    %cst_25 = arith.constant dense<0xFF800000> : vector<2x1xf32>
    %81 = vector.multi_reduction <maximumf>, %80, %cst_25 [2] : vector<2x1x256xf32> to vector<2x1xf32>
    %82 = vector.shape_cast %81 : vector<2x1xf32> to vector<2x1x1xf32>
    %83 = vector.broadcast %82 : vector<2x1x1xf32> to vector<2x1x256xf32>
    %84 = arith.cmpf oeq, %80, %83 : vector<2x1x256xf32>
    %c256_i32_26 = arith.constant 256 : i32
    %85 = vector.shape_cast %4 : vector<1x1x256xi32> to vector<1x1x256xi32>
    %86 = vector.broadcast %85 : vector<1x1x256xi32> to vector<2x1x256xi32>
    %87 = vector.broadcast %c256_i32_26 : i32 to vector<2x1x256xi32>
    %88 = arith.select %84, %86, %87 : vector<2x1x256xi1>, vector<2x1x256xi32>
    %cst_27 = arith.constant dense<2147483647> : vector<2x1xi32>
    %89 = vector.multi_reduction <minsi>, %88, %cst_27 [2] : vector<2x1x256xi32> to vector<2x1xi32>
    %90 = vector.shape_cast %89 : vector<2x1xi32> to vector<2x1x1xi32>
    %91 = vector.broadcast %4 : vector<1x1x256xi32> to vector<2x1x256xi32>
    %92 = vector.broadcast %90 : vector<2x1x1xi32> to vector<2x1x256xi32>
    %93 = arith.cmpi eq, %91, %92 : vector<2x1x256xi32>
    %94 = arith.extui %93 : vector<2x1x256xi1> to vector<2x1x256xi32>
    %95 = arith.sitofp %94 : vector<2x1x256xi32> to vector<2x1x256xf32>
    %c0_28 = arith.constant 0 : index
    %96 = arith.index_cast %c4_i32 : i32 to index
    %c0_29 = arith.constant 0 : index
    %97 = vector.load %arg3[%c0_28, %96, %c0_29] : memref<2x8x256xf32, #tpu.memory_space<vmem>>, vector<2x1x256xf32>
    tpu.vector_store %arg3[%c0_28, %96, %c0_29], %95 {strides = array<i32>} : memref<2x8x256xf32, #tpu.memory_space<vmem>>, vector<2x1x256xf32>,
    %cst_30 = arith.constant 0xFF800000 : f32
    %98 = vector.broadcast %cst_30 : f32 to vector<2x1x256xf32>
    %99 = arith.select %93, %98, %80 : vector<2x1x256xi1>, vector<2x1x256xf32>
    %c5_i32 = arith.constant 5 : i32
    %cst_31 = arith.constant dense<0xFF800000> : vector<2x1xf32>
    %100 = vector.multi_reduction <maximumf>, %99, %cst_31 [2] : vector<2x1x256xf32> to vector<2x1xf32>
    %101 = vector.shape_cast %100 : vector<2x1xf32> to vector<2x1x1xf32>
    %102 = vector.broadcast %101 : vector<2x1x1xf32> to vector<2x1x256xf32>
    %103 = arith.cmpf oeq, %99, %102 : vector<2x1x256xf32>
    %c256_i32_32 = arith.constant 256 : i32
    %104 = vector.shape_cast %4 : vector<1x1x256xi32> to vector<1x1x256xi32>
    %105 = vector.broadcast %104 : vector<1x1x256xi32> to vector<2x1x256xi32>
    %106 = vector.broadcast %c256_i32_32 : i32 to vector<2x1x256xi32>
    %107 = arith.select %103, %105, %106 : vector<2x1x256xi1>, vector<2x1x256xi32>
    %cst_33 = arith.constant dense<2147483647> : vector<2x1xi32>
    %108 = vector.multi_reduction <minsi>, %107, %cst_33 [2] : vector<2x1x256xi32> to vector<2x1xi32>
    %109 = vector.shape_cast %108 : vector<2x1xi32> to vector<2x1x1xi32>
    %110 = vector.broadcast %4 : vector<1x1x256xi32> to vector<2x1x256xi32>
    %111 = vector.broadcast %109 : vector<2x1x1xi32> to vector<2x1x256xi32>
    %112 = arith.cmpi eq, %110, %111 : vector<2x1x256xi32>
    %113 = arith.extui %112 : vector<2x1x256xi1> to vector<2x1x256xi32>
    %114 = arith.sitofp %113 : vector<2x1x256xi32> to vector<2x1x256xf32>
    %c0_34 = arith.constant 0 : index
    %115 = arith.index_cast %c5_i32 : i32 to index
    %c0_35 = arith.constant 0 : index
    %116 = vector.load %arg3[%c0_34, %115, %c0_35] : memref<2x8x256xf32, #tpu.memory_space<vmem>>, vector<2x1x256xf32>
    tpu.vector_store %arg3[%c0_34, %115, %c0_35], %114 {strides = array<i32>} : memref<2x8x256xf32, #tpu.memory_space<vmem>>, vector<2x1x256xf32>,
    %cst_36 = arith.constant 0xFF800000 : f32
    %117 = vector.broadcast %cst_36 : f32 to vector<2x1x256xf32>
    %118 = arith.select %112, %117, %99 : vector<2x1x256xi1>, vector<2x1x256xf32>
    %c6_i32 = arith.constant 6 : i32
    %cst_37 = arith.constant dense<0xFF800000> : vector<2x1xf32>
    %119 = vector.multi_reduction <maximumf>, %118, %cst_37 [2] : vector<2x1x256xf32> to vector<2x1xf32>
    %120 = vector.shape_cast %119 : vector<2x1xf32> to vector<2x1x1xf32>
    %121 = vector.broadcast %120 : vector<2x1x1xf32> to vector<2x1x256xf32>
    %122 = arith.cmpf oeq, %118, %121 : vector<2x1x256xf32>
    %c256_i32_38 = arith.constant 256 : i32
    %123 = vector.shape_cast %4 : vector<1x1x256xi32> to vector<1x1x256xi32>
    %124 = vector.broadcast %123 : vector<1x1x256xi32> to vector<2x1x256xi32>
    %125 = vector.broadcast %c256_i32_38 : i32 to vector<2x1x256xi32>
    %126 = arith.select %122, %124, %125 : vector<2x1x256xi1>, vector<2x1x256xi32>
    %cst_39 = arith.constant dense<2147483647> : vector<2x1xi32>
    %127 = vector.multi_reduction <minsi>, %126, %cst_39 [2] : vector<2x1x256xi32> to vector<2x1xi32>
    %128 = vector.shape_cast %127 : vector<2x1xi32> to vector<2x1x1xi32>
    %129 = vector.broadcast %4 : vector<1x1x256xi32> to vector<2x1x256xi32>
    %130 = vector.broadcast %128 : vector<2x1x1xi32> to vector<2x1x256xi32>
    %131 = arith.cmpi eq, %129, %130 : vector<2x1x256xi32>
    %132 = arith.extui %131 : vector<2x1x256xi1> to vector<2x1x256xi32>
    %133 = arith.sitofp %132 : vector<2x1x256xi32> to vector<2x1x256xf32>
    %c0_40 = arith.constant 0 : index
    %134 = arith.index_cast %c6_i32 : i32 to index
    %c0_41 = arith.constant 0 : index
    %135 = vector.load %arg3[%c0_40, %134, %c0_41] : memref<2x8x256xf32, #tpu.memory_space<vmem>>, vector<2x1x256xf32>
    tpu.vector_store %arg3[%c0_40, %134, %c0_41], %133 {strides = array<i32>} : memref<2x8x256xf32, #tpu.memory_space<vmem>>, vector<2x1x256xf32>,
    %cst_42 = arith.constant 0xFF800000 : f32
    %136 = vector.broadcast %cst_42 : f32 to vector<2x1x256xf32>
    %137 = arith.select %131, %136, %118 : vector<2x1x256xi1>, vector<2x1x256xf32>
    %c7_i32 = arith.constant 7 : i32
    %cst_43 = arith.constant dense<0xFF800000> : vector<2x1xf32>
    %138 = vector.multi_reduction <maximumf>, %137, %cst_43 [2] : vector<2x1x256xf32> to vector<2x1xf32>
    %139 = vector.shape_cast %138 : vector<2x1xf32> to vector<2x1x1xf32>
    %140 = vector.broadcast %139 : vector<2x1x1xf32> to vector<2x1x256xf32>
    %141 = arith.cmpf oeq, %137, %140 : vector<2x1x256xf32>
    %c256_i32_44 = arith.constant 256 : i32
    %142 = vector.shape_cast %4 : vector<1x1x256xi32> to vector<1x1x256xi32>
    %143 = vector.broadcast %142 : vector<1x1x256xi32> to vector<2x1x256xi32>
    %144 = vector.broadcast %c256_i32_44 : i32 to vector<2x1x256xi32>
    %145 = arith.select %141, %143, %144 : vector<2x1x256xi1>, vector<2x1x256xi32>
    %cst_45 = arith.constant dense<2147483647> : vector<2x1xi32>
    %146 = vector.multi_reduction <minsi>, %145, %cst_45 [2] : vector<2x1x256xi32> to vector<2x1xi32>
    %147 = vector.shape_cast %146 : vector<2x1xi32> to vector<2x1x1xi32>
    %148 = vector.broadcast %4 : vector<1x1x256xi32> to vector<2x1x256xi32>
    %149 = vector.broadcast %147 : vector<2x1x1xi32> to vector<2x1x256xi32>
    %150 = arith.cmpi eq, %148, %149 : vector<2x1x256xi32>
    %151 = arith.extui %150 : vector<2x1x256xi1> to vector<2x1x256xi32>
    %152 = arith.sitofp %151 : vector<2x1x256xi32> to vector<2x1x256xf32>
    %c0_46 = arith.constant 0 : index
    %153 = arith.index_cast %c7_i32 : i32 to index
    %c0_47 = arith.constant 0 : index
    %154 = vector.load %arg3[%c0_46, %153, %c0_47] : memref<2x8x256xf32, #tpu.memory_space<vmem>>, vector<2x1x256xf32>
    tpu.vector_store %arg3[%c0_46, %153, %c0_47], %152 {strides = array<i32>} : memref<2x8x256xf32, #tpu.memory_space<vmem>>, vector<2x1x256xf32>,
    %cst_48 = arith.constant 0xFF800000 : f32
    %155 = vector.broadcast %cst_48 : f32 to vector<2x1x256xf32>
    %156 = arith.select %150, %155, %137 : vector<2x1x256xi1>, vector<2x1x256xf32>
    %c8_i32 = arith.constant 8 : i32
    %c0_49 = arith.constant 0 : index
    %c0_50 = arith.constant 0 : index
    %c0_51 = arith.constant 0 : index
    %157 = vector.load %arg1[%c0_49, %c0_50, %c0_51] : memref<2x4x256xf32, #tpu.memory_space<vmem>>, vector<2x4x256xf32>
    %c0_52 = arith.constant 0 : index
    %c0_53 = arith.constant 0 : index
    %c0_54 = arith.constant 0 : index
    %158 = vector.load %arg3[%c0_52, %c0_53, %c0_54] : memref<2x8x256xf32, #tpu.memory_space<vmem>>, vector<2x8x256xf32>
    "tpu.trace_start"() <{level = 10 : i32, message = "bcn,bkn->bck"}> : () -> ()
    %cst_55 = arith.constant dense<0.000000e+00> : vector<2x4x8xf32>
    %159 = tpu.matmul %157, %158, %cst_55 {dimension_numbers = #tpu.dot_dimension_numbers<[2], [2], [1], [1], [0, 0, 0, 1, 1, 1], [0], [0]>} : vector<2x4x256xf32>, vector<2x8x256xf32>, vector<2x4x8xf32> -> vector<2x4x8xf32>
    "tpu.trace_stop"() : () -> ()
    %c0_56 = arith.constant 0 : index
    %c0_57 = arith.constant 0 : index
    %c0_58 = arith.constant 0 : index
    %160 = vector.load %arg2[%c0_56, %c0_57, %c0_58] : memref<2x4x8xf32, #tpu.memory_space<vmem>>, vector<2x4x8xf32>
    tpu.vector_store %arg2[%c0_56, %c0_57, %c0_58], %159 {strides = array<i32>} : memref<2x4x8xf32, #tpu.memory_space<vmem>>, vector<2x4x8xf32>,
    return
  }
  func.func @transform_0(%arg0: i32) -> (i32, i32, i32) {
    %c0_i32 = arith.constant 0 : i32
    %c0_i32_0 = arith.constant 0 : i32
    %c0_i32_1 = arith.constant 0 : i32
    return %arg0, %c0_i32, %c0_i32_0 : i32, i32, i32
  }
  func.func @transform_1(%arg0: i32) -> (i32, i32, i32) {
    %c0_i32 = arith.constant 0 : i32
    %c0_i32_0 = arith.constant 0 : i32
    %c0_i32_1 = arith.constant 0 : i32
    return %arg0, %c0_i32, %c0_i32_0 : i32, i32, i32
  }
}

</mosaic_0001>

<llo_original>
// kernel: tpu_custom_call.1
$region0: #{tpu_custom_call.1}
  #allocation0 [shape = 'u32[]', space=smem, size = 0x4, offset = 0x4, fixed_abs, tag = 'smem constant byte address 0x4 - core index']
  #allocation1 [shape = 'u32[144,128]{1,0:T(1,128)}', space=vmem, size = 0x12000, scoped, tag = 'internal scratch']
  #allocation2 [shape = 'f32[2,8,256]{2,1,0:T(8,128)}', space=vmem, size = 0x4000, scoped, tag = 'scratch operand']
  %s0 = inlined_call_operand.hbm [shape: f32[2,4,256], index: 0, kind: input, shape index: {}]
  %s1 = inlined_call_operand.hbm [shape: f32[2,4,8], index: 1, kind: output, shape index: {}]
  %s2 = sld [smem:[#allocation0]]
  $region18: #{tpu_custom_call.1} parent=0
    _
  %s4 = ssub.s32 1, %s2
  %s5 = scalar_select 0, %s4, %s2
  $region1: #{tpu_custom_call.1} parent=0
    #allocation3 [shape = 'u8[8192]{0}', space=vmem, size = 0x2000, scoped, tag = 'input window, operand 0, single buffered']
    #allocation4 [shape = 's32[1]{0}', space=sflag, size = 0x4, scoped, tag = 'scoped memory for tpu_custom_call.1']
    #allocation5 [shape = 's32[1]{0}', space=sflag, size = 0x4, scoped, tag = 'scoped memory for tpu_custom_call.1']
    #allocation6 [shape = 'u8[4096]{0}', space=vmem, size = 0x1000, scoped, tag = 'output window, operand 0, single buffered']
    %6 = vsyncpa [#allocation4], 0
    %7 = vsyncpa [#allocation5], 0
    // Predicated region
    $region2: #{tpu_custom_call.1} parent=1 // pred_check
      _
    $region3: #{tpu_custom_call.1} parent=1 // pred_check_branch
      %9 = sbr.rel (0) target = $region5
    $region4: #{tpu_custom_call.1} parent=1 // pred_region
      %s11 = ssub.s32 256, 256
      %12 = vsyncadd [#allocation4], %s11
      %s13 = sshll.u32 [#allocation3], 4
      %s14 = int_to_ptr.vmem [resolvable:$true] %s13
      %19 = dma.hbm_to_vmem [thread:$0]  %s0, 256, %s14, [#allocation4], 128, 128, 8
    $region5: #{tpu_custom_call.1} parent=1 // pred_fallthru
      _
    // Predicated region
    $region6: #{tpu_custom_call.1} parent=1 // pred_check
      _
    $region7: #{tpu_custom_call.1} parent=1 // pred_check_branch
      %21 = sbr.rel (0) target = $region9
    $region8: #{tpu_custom_call.1} parent=1 // pred_region
      %22 = dma.done [#allocation4], 256
    $region9: #{tpu_custom_call.1} parent=1 // pred_fallthru
      _
    %v23 = vld [vmem:[#allocation3] sm:$0xff]
    %v24 = vld [vmem:[#allocation3 + $0x8] sm:$0xff]
    %v25 = vmul.f32 %v23, %v23
    %v26 = vmul.f32 %v24, %v24
    %v29 = vcombine.high %v25, %v25
    %v30 = vcombine.high %v26, %v26
    %vm33 = vcmask 1043456
    %v34 = vsel %vm33, %v25, 0.0
    %v35 = vrot.slane %v34, 4
    %v36 = vadd.f32 %v34, %v35
    %v37 = vrot.slane %v36, 2
    %v38 = vadd.f32 %v36, %v37
    %v39 = vrot.slane %v38, 1
    %v40 = vadd.f32 %v38, %v39
    %v41 = vsel %vm33, %v29, 0.0
    %v42 = vrot.slane %v41, 4
    %v43 = vadd.f32 %v41, %v42
    %v44 = vrot.slane %v43, 2
    %v45 = vadd.f32 %v43, %v44
    %v46 = vrot.slane %v45, 1
    %v47 = vadd.f32 %v45, %v46
    %v48 = vsel %vm33, %v26, 0.0
    %v49 = vrot.slane %v48, 4
    %v50 = vadd.f32 %v48, %v49
    %v51 = vrot.slane %v50, 2
    %v52 = vadd.f32 %v50, %v51
    %v53 = vrot.slane %v52, 1
    %v54 = vadd.f32 %v52, %v53
    %v55 = vsel %vm33, %v30, 0.0
    %v56 = vrot.slane %v55, 4
    %v57 = vadd.f32 %v55, %v56
    %v58 = vrot.slane %v57, 2
    %v59 = vadd.f32 %v57, %v58
    %v60 = vrot.slane %v59, 1
    %v61 = vadd.f32 %v59, %v60
    %v62 = vlaneseq
    %v63 = vand.u32 %v62, 127
    %v64 = vadd.s32 %v63, 128
    %v65 = vmax.f32 %v40, %v47
    %66 = vmax.xlane.f32.xlu0 %v65
    %v67 = vpop.xlane.xlu0 %66
    %v68 = vmax.f32 %v54, %v61
    %69 = vmax.xlane.f32.xlu0 %v68
    %v70 = vpop.xlane.xlu0 %69
    %vm71 = vcmp.eq.f32.partialorder %v40, %v67
    %vm72 = vcmp.eq.f32.partialorder %v47, %v67
    %vm73 = vcmp.eq.f32.partialorder %v54, %v70
    %vm74 = vcmp.eq.f32.partialorder %v61, %v70
    %v75 = vsel %vm71, %v63, 256
    %v76 = vsel %vm72, %v64, 256
    %v77 = vsel %vm73, %v63, 256
    %v78 = vsel %vm74, %v64, 256
    %vm79 = vcmp.lt.s32.totalorder %v75, %v76
    %v80 = vsel %vm79, %v75, %v76
    %v81 = vand.u32 %v80, 65535
    %v82 = vshra.s32 %v80, 16
    %v83 = vcvt.s32.f32 %v81
    %v84 = vcvt.s32.f32 %v82
    %85 = vmin.xlane.f32.xlu0 %v84
    %v86 = vpop.xlane.xlu0 %85
    %vm87 = vcmp.eq.f32.partialorder %v84, %v86
    %v88 = vsel %vm87, %v83, inf
    %89 = vmin.xlane.f32.xlu0 %v88
    %v90 = vpop.xlane.xlu0 %89
    %v91 = vcvt.f32.s32 %v90
    %v92 = vcvt.f32.s32 %v86
    %v93 = vshll.u32 %v92, 16
    %v94 = vadd.s32 %v93, %v91
    %vm95 = vcmp.lt.s32.totalorder %v77, %v78
    %v96 = vsel %vm95, %v77, %v78
    %v97 = vand.u32 %v96, 65535
    %v98 = vshra.s32 %v96, 16
    %v99 = vcvt.s32.f32 %v97
    %v100 = vcvt.s32.f32 %v98
    %101 = vmin.xlane.f32.xlu0 %v100
    %v102 = vpop.xlane.xlu0 %101
    %vm103 = vcmp.eq.f32.partialorder %v100, %v102
    %v104 = vsel %vm103, %v99, inf
    %105 = vmin.xlane.f32.xlu0 %v104
    %v106 = vpop.xlane.xlu0 %105
    %v107 = vcvt.f32.s32 %v106
    %v108 = vcvt.f32.s32 %v102
    %v109 = vshll.u32 %v108, 16
    %v110 = vadd.s32 %v109, %v107
    %vm111 = vcmp.eq.s32.totalorder %v63, %v94
    %vm112 = vcmp.eq.s32.totalorder %v64, %v94
    %vm113 = vcmp.eq.s32.totalorder %v63, %v110
    %vm114 = vcmp.eq.s32.totalorder %v64, %v110
    %v115 = vsel %vm111, 1, 0
    %v116 = vsel %vm112, 1, 0
    %v117 = vsel %vm113, 1, 0
    %v118 = vsel %vm114, 1, 0
    %v119 = vcvt.s32.f32 %v115
    %v120 = vcvt.s32.f32 %v116
    %v121 = vcvt.s32.f32 %v117
    %v122 = vcvt.s32.f32 %v118
    %v127 = vcombine.low %v119, %v120
    %v129 = vunpack.c.l.s4 1966171168
    %v130 = vunpack.c.0.s8 %v129
    %v131 = vlaneseq
    %v132 = vshrl.u32 %v131, 7
    %v133 = vsub.s32 %v130, %v132
    %v134 = vrot.slane %v127, %v133
    %v136 = vunpack.c.l.s4 1966171168
    %v137 = vunpack.c.0.s8 %v136
    %v138 = vlaneseq
    %v139 = vshrl.u32 %v138, 7
    %v140 = vsub.s32 %v137, %v139
    %v141 = vrot.slane %v134, %v140
    %v142 = vcombine.low %v121, %v122
    %v144 = vunpack.c.l.s4 1966171168
    %v145 = vunpack.c.0.s8 %v144
    %v146 = vlaneseq
    %v147 = vshrl.u32 %v146, 7
    %v148 = vsub.s32 %v145, %v147
    %v149 = vrot.slane %v142, %v148
    %v151 = vunpack.c.l.s4 1966171168
    %v152 = vunpack.c.0.s8 %v151
    %v153 = vlaneseq
    %v154 = vshrl.u32 %v153, 7
    %v155 = vsub.s32 %v152, %v154
    %v156 = vrot.slane %v149, %v155
    %v159 = vlaneseq
    %vm160 = vcmp.ge.s32.totalorder %v159, 0
    %vm161 = vcmp.lt.s32.totalorder %v159, 256
    %vm162 = vmand %vm160, %vm161
    %163 = vst.msk [vmem:[#allocation2] ss:$8 sm:$0x3] %vm162, %v141
    %164 = vst.msk [vmem:[#allocation2] ss:$8 sm:$0x0] %vm162, %v141
    %s165 = scalar_lea.vmem [#allocation2], 16
    %166 = vst.msk [vmem:[%s165] ss:$8 sm:$0x3] %vm162, %v156
    %167 = vst.msk [vmem:[%s165] ss:$8 sm:$0x0] %vm162, %v156
    %v168 = vsel %vm111, -inf, %v40
    %v169 = vsel %vm112, -inf, %v47
    %v170 = vsel %vm113, -inf, %v54
    %v171 = vsel %vm114, -inf, %v61
    %v172 = vmax.f32 %v168, %v169
    %173 = vmax.xlane.f32.xlu0 %v172
    %v174 = vpop.xlane.xlu0 %173
    %v175 = vmax.f32 %v170, %v171
    %176 = vmax.xlane.f32.xlu0 %v175
    %v177 = vpop.xlane.xlu0 %176
    %vm178 = vcmp.eq.f32.partialorder %v168, %v174
    %vm179 = vcmp.eq.f32.partialorder %v169, %v174
    %vm180 = vcmp.eq.f32.partialorder %v170, %v177
    %vm181 = vcmp.eq.f32.partialorder %v171, %v177
    %v182 = vsel %vm178, %v63, 256
    %v183 = vsel %vm179, %v64, 256
    %v184 = vsel %vm180, %v63, 256
    %v185 = vsel %vm181, %v64, 256
    %vm186 = vcmp.lt.s32.totalorder %v182, %v183
    %v187 = vsel %vm186, %v182, %v183
    %v188 = vand.u32 %v187, 65535
    %v189 = vshra.s32 %v187, 16
    %v190 = vcvt.s32.f32 %v188
    %v191 = vcvt.s32.f32 %v189
    %192 = vmin.xlane.f32.xlu0 %v191
    %v193 = vpop.xlane.xlu0 %192
    %vm194 = vcmp.eq.f32.partialorder %v191, %v193
    %v195 = vsel %vm194, %v190, inf
    %196 = vmin.xlane.f32.xlu0 %v195
    %v197 = vpop.xlane.xlu0 %196
    %v198 = vcvt.f32.s32 %v197
    %v199 = vcvt.f32.s32 %v193
    %v200 = vshll.u32 %v199, 16
    %v201 = vadd.s32 %v200, %v198
    %vm202 = vcmp.lt.s32.totalorder %v184, %v185
    %v203 = vsel %vm202, %v184, %v185
    %v204 = vand.u32 %v203, 65535
    %v205 = vshra.s32 %v203, 16
    %v206 = vcvt.s32.f32 %v204
    %v207 = vcvt.s32.f32 %v205
    %208 = vmin.xlane.f32.xlu0 %v207
    %v209 = vpop.xlane.xlu0 %208
    %vm210 = vcmp.eq.f32.partialorder %v207, %v209
    %v211 = vsel %vm210, %v206, inf
    %212 = vmin.xlane.f32.xlu0 %v211
    %v213 = vpop.xlane.xlu0 %212
    %v214 = vcvt.f32.s32 %v213
    %v215 = vcvt.f32.s32 %v209
    %v216 = vshll.u32 %v215, 16
    %v217 = vadd.s32 %v216, %v214
    %vm218 = vcmp.eq.s32.totalorder %v63, %v201
    %vm219 = vcmp.eq.s32.totalorder %v64, %v201
    %vm220 = vcmp.eq.s32.totalorder %v63, %v217
    %vm221 = vcmp.eq.s32.totalorder %v64, %v217
    %v222 = vsel %vm218, 1, 0
    %v223 = vsel %vm219, 1, 0
    %v224 = vsel %vm220, 1, 0
    %v225 = vsel %vm221, 1, 0
    %v226 = vcvt.s32.f32 %v222
    %v227 = vcvt.s32.f32 %v223
    %v228 = vcvt.s32.f32 %v224
    %v229 = vcvt.s32.f32 %v225
    %v234 = vcombine.low %v226, %v227
    %v236 = vunpack.c.l.s4 1966171168
    %v237 = vunpack.c.0.s8 %v236
    %v238 = vlaneseq
    %v239 = vshrl.u32 %v238, 7
    %v240 = vsub.s32 %v237, %v239
    %v241 = vrot.slane %v234, %v240
    %v243 = vunpack.c.l.s4 1966171168
    %v244 = vunpack.c.0.s8 %v243
    %v245 = vlaneseq
    %v246 = vshrl.u32 %v245, 7
    %v247 = vsub.s32 %v244, %v246
    %v248 = vrot.slane %v241, %v247
    %v249 = vcombine.low %v228, %v229
    %v251 = vunpack.c.l.s4 1966171168
    %v252 = vunpack.c.0.s8 %v251
    %v253 = vlaneseq
    %v254 = vshrl.u32 %v253, 7
    %v255 = vsub.s32 %v252, %v254
    %v256 = vrot.slane %v249, %v255
    %v258 = vunpack.c.l.s4 1966171168
    %v259 = vunpack.c.0.s8 %v258
    %v260 = vlaneseq
    %v261 = vshrl.u32 %v260, 7
    %v262 = vsub.s32 %v259, %v261
    %v263 = vrot.slane %v256, %v262
    %s266 = scalar_lea.vmem [#allocation2], 1
    %267 = vst.msk [vmem:[%s266] ss:$8 sm:$0x3] %vm162, %v248
    %268 = vst.msk [vmem:[%s266] ss:$8 sm:$0x0] %vm162, %v248
    %s269 = scalar_lea.vmem [#allocation2], 17
    %270 = vst.msk [vmem:[%s269] ss:$8 sm:$0x3] %vm162, %v263
    %271 = vst.msk [vmem:[%s269] ss:$8 sm:$0x0] %vm162, %v263
    %v272 = vsel %vm218, -inf, %v168
    %v273 = vsel %vm219, -inf, %v169
    %v274 = vsel %vm220, -inf, %v170
    %v275 = vsel %vm221, -inf, %v171
    %v276 = vmax.f32 %v272, %v273
    %277 = vmax.xlane.f32.xlu0 %v276
    %v278 = vpop.xlane.xlu0 %277
    %v279 = vmax.f32 %v274, %v275
    %280 = vmax.xlane.f32.xlu0 %v279
    %v281 = vpop.xlane.xlu0 %280
    %vm282 = vcmp.eq.f32.partialorder %v272, %v278
    %vm283 = vcmp.eq.f32.partialorder %v273, %v278
    %vm284 = vcmp.eq.f32.partialorder %v274, %v281
    %vm285 = vcmp.eq.f32.partialorder %v275, %v281
    %v286 = vsel %vm282, %v63, 256
    %v287 = vsel %vm283, %v64, 256
    %v288 = vsel %vm284, %v63, 256
    %v289 = vsel %vm285, %v64, 256
    %vm290 = vcmp.lt.s32.totalorder %v286, %v287
    %v291 = vsel %vm290, %v286, %v287
    %v292 = vand.u32 %v291, 65535
    %v293 = vshra.s32 %v291, 16
    %v294 = vcvt.s32.f32 %v292
    %v295 = vcvt.s32.f32 %v293
    %296 = vmin.xlane.f32.xlu0 %v295
    %v297 = vpop.xlane.xlu0 %296
    %vm298 = vcmp.eq.f32.partialorder %v295, %v297
    %v299 = vsel %vm298, %v294, inf
    %300 = vmin.xlane.f32.xlu0 %v299
    %v301 = vpop.xlane.xlu0 %300
    %v302 = vcvt.f32.s32 %v301
    %v303 = vcvt.f32.s32 %v297
    %v304 = vshll.u32 %v303, 16
    %v305 = vadd.s32 %v304, %v302
    %vm306 = vcmp.lt.s32.totalorder %v288, %v289
    %v307 = vsel %vm306, %v288, %v289
    %v308 = vand.u32 %v307, 65535
    %v309 = vshra.s32 %v307, 16
    %v310 = vcvt.s32.f32 %v308
    %v311 = vcvt.s32.f32 %v309
    %312 = vmin.xlane.f32.xlu0 %v311
    %v313 = vpop.xlane.xlu0 %312
    %vm314 = vcmp.eq.f32.partialorder %v311, %v313
    %v315 = vsel %vm314, %v310, inf
    %316 = vmin.xlane.f32.xlu0 %v315
    %v317 = vpop.xlane.xlu0 %316
    %v318 = vcvt.f32.s32 %v317
    %v319 = vcvt.f32.s32 %v313
    %v320 = vshll.u32 %v319, 16
    %v321 = vadd.s32 %v320, %v318
    %vm322 = vcmp.eq.s32.totalorder %v63, %v305
    %vm323 = vcmp.eq.s32.totalorder %v64, %v305
    %vm324 = vcmp.eq.s32.totalorder %v63, %v321
    %vm325 = vcmp.eq.s32.totalorder %v64, %v321
    %v326 = vsel %vm322, 1, 0
    %v327 = vsel %vm323, 1, 0
    %v328 = vsel %vm324, 1, 0
    %v329 = vsel %vm325, 1, 0
    %v330 = vcvt.s32.f32 %v326
    %v331 = vcvt.s32.f32 %v327
    %v332 = vcvt.s32.f32 %v328
    %v333 = vcvt.s32.f32 %v329
    %v338 = vcombine.low %v330, %v331
    %v340 = vunpack.c.l.s4 1966171168
    %v341 = vunpack.c.0.s8 %v340
    %v342 = vlaneseq
    %v343 = vshrl.u32 %v342, 7
    %v344 = vsub.s32 %v341, %v343
    %v345 = vrot.slane %v338, %v344
    %v347 = vunpack.c.l.s4 1966171168
    %v348 = vunpack.c.0.s8 %v347
    %v349 = vlaneseq
    %v350 = vshrl.u32 %v349, 7
    %v351 = vsub.s32 %v348, %v350
    %v352 = vrot.slane %v345, %v351
    %v353 = vcombine.low %v332, %v333
    %v355 = vunpack.c.l.s4 1966171168
    %v356 = vunpack.c.0.s8 %v355
    %v357 = vlaneseq
    %v358 = vshrl.u32 %v357, 7
    %v359 = vsub.s32 %v356, %v358
    %v360 = vrot.slane %v353, %v359
    %v362 = vunpack.c.l.s4 1966171168
    %v363 = vunpack.c.0.s8 %v362
    %v364 = vlaneseq
    %v365 = vshrl.u32 %v364, 7
    %v366 = vsub.s32 %v363, %v365
    %v367 = vrot.slane %v360, %v366
    %s370 = scalar_lea.vmem [#allocation2], 2
    %371 = vst.msk [vmem:[%s370] ss:$8 sm:$0x3] %vm162, %v352
    %372 = vst.msk [vmem:[%s370] ss:$8 sm:$0x0] %vm162, %v352
    %s373 = scalar_lea.vmem [#allocation2], 18
    %374 = vst.msk [vmem:[%s373] ss:$8 sm:$0x3] %vm162, %v367
    %375 = vst.msk [vmem:[%s373] ss:$8 sm:$0x0] %vm162, %v367
    %v376 = vsel %vm322, -inf, %v272
    %v377 = vsel %vm323, -inf, %v273
    %v378 = vsel %vm324, -inf, %v274
    %v379 = vsel %vm325, -inf, %v275
    %v380 = vmax.f32 %v376, %v377
    %381 = vmax.xlane.f32.xlu0 %v380
    %v382 = vpop.xlane.xlu0 %381
    %v383 = vmax.f32 %v378, %v379
    %384 = vmax.xlane.f32.xlu0 %v383
    %v385 = vpop.xlane.xlu0 %384
    %vm386 = vcmp.eq.f32.partialorder %v376, %v382
    %vm387 = vcmp.eq.f32.partialorder %v377, %v382
    %vm388 = vcmp.eq.f32.partialorder %v378, %v385
    %vm389 = vcmp.eq.f32.partialorder %v379, %v385
    %v390 = vsel %vm386, %v63, 256
    %v391 = vsel %vm387, %v64, 256
    %v392 = vsel %vm388, %v63, 256
    %v393 = vsel %vm389, %v64, 256
    %vm394 = vcmp.lt.s32.totalorder %v390, %v391
    %v395 = vsel %vm394, %v390, %v391
    %v396 = vand.u32 %v395, 65535
    %v397 = vshra.s32 %v395, 16
    %v398 = vcvt.s32.f32 %v396
    %v399 = vcvt.s32.f32 %v397
    %400 = vmin.xlane.f32.xlu0 %v399
    %v401 = vpop.xlane.xlu0 %400
    %vm402 = vcmp.eq.f32.partialorder %v399, %v401
    %v403 = vsel %vm402, %v398, inf
    %404 = vmin.xlane.f32.xlu0 %v403
    %v405 = vpop.xlane.xlu0 %404
    %v406 = vcvt.f32.s32 %v405
    %v407 = vcvt.f32.s32 %v401
    %v408 = vshll.u32 %v407, 16
    %v409 = vadd.s32 %v408, %v406
    %vm410 = vcmp.lt.s32.totalorder %v392, %v393
    %v411 = vsel %vm410, %v392, %v393
    %v412 = vand.u32 %v411, 65535
    %v413 = vshra.s32 %v411, 16
    %v414 = vcvt.s32.f32 %v412
    %v415 = vcvt.s32.f32 %v413
    %416 = vmin.xlane.f32.xlu0 %v415
    %v417 = vpop.xlane.xlu0 %416
    %vm418 = vcmp.eq.f32.partialorder %v415, %v417
    %v419 = vsel %vm418, %v414, inf
    %420 = vmin.xlane.f32.xlu0 %v419
    %v421 = vpop.xlane.xlu0 %420
    %v422 = vcvt.f32.s32 %v421
    %v423 = vcvt.f32.s32 %v417
    %v424 = vshll.u32 %v423, 16
    %v425 = vadd.s32 %v424, %v422
    %vm426 = vcmp.eq.s32.totalorder %v63, %v409
    %vm427 = vcmp.eq.s32.totalorder %v64, %v409
    %vm428 = vcmp.eq.s32.totalorder %v63, %v425
    %vm429 = vcmp.eq.s32.totalorder %v64, %v425
    %v430 = vsel %vm426, 1, 0
    %v431 = vsel %vm427, 1, 0
    %v432 = vsel %vm428, 1, 0
    %v433 = vsel %vm429, 1, 0
    %v434 = vcvt.s32.f32 %v430
    %v435 = vcvt.s32.f32 %v431
    %v436 = vcvt.s32.f32 %v432
    %v437 = vcvt.s32.f32 %v433
    %v442 = vcombine.low %v434, %v435
    %v444 = vunpack.c.l.s4 1966171168
    %v445 = vunpack.c.0.s8 %v444
    %v446 = vlaneseq
    %v447 = vshrl.u32 %v446, 7
    %v448 = vsub.s32 %v445, %v447
    %v449 = vrot.slane %v442, %v448
    %v451 = vunpack.c.l.s4 1966171168
    %v452 = vunpack.c.0.s8 %v451
    %v453 = vlaneseq
    %v454 = vshrl.u32 %v453, 7
    %v455 = vsub.s32 %v452, %v454
    %v456 = vrot.slane %v449, %v455
    %v457 = vcombine.low %v436, %v437
    %v459 = vunpack.c.l.s4 1966171168
    %v460 = vunpack.c.0.s8 %v459
    %v461 = vlaneseq
    %v462 = vshrl.u32 %v461, 7
    %v463 = vsub.s32 %v460, %v462
    %v464 = vrot.slane %v457, %v463
    %v466 = vunpack.c.l.s4 1966171168
    %v467 = vunpack.c.0.s8 %v466
    %v468 = vlaneseq
    %v469 = vshrl.u32 %v468, 7
    %v470 = vsub.s32 %v467, %v469
    %v471 = vrot.slane %v464, %v470
    %s474 = scalar_lea.vmem [#allocation2], 3
    %475 = vst.msk [vmem:[%s474] ss:$8 sm:$0x3] %vm162, %v456
    %476 = vst.msk [vmem:[%s474] ss:$8 sm:$0x0] %vm162, %v456
    %s477 = scalar_lea.vmem [#allocation2], 19
    %478 = vst.msk [vmem:[%s477] ss:$8 sm:$0x3] %vm162, %v471
    %479 = vst.msk [vmem:[%s477] ss:$8 sm:$0x0] %vm162, %v471
    %v480 = vsel %vm426, -inf, %v376
    %v481 = vsel %vm427, -inf, %v377
    %v482 = vsel %vm428, -inf, %v378
    %v483 = vsel %vm429, -inf, %v379
    %v484 = vmax.f32 %v480, %v481
    %485 = vmax.xlane.f32.xlu0 %v484
    %v486 = vpop.xlane.xlu0 %485
    %v487 = vmax.f32 %v482, %v483
    %488 = vmax.xlane.f32.xlu0 %v487
    %v489 = vpop.xlane.xlu0 %488
    %vm490 = vcmp.eq.f32.partialorder %v480, %v486
    %vm491 = vcmp.eq.f32.partialorder %v481, %v486
    %vm492 = vcmp.eq.f32.partialorder %v482, %v489
    %vm493 = vcmp.eq.f32.partialorder %v483, %v489
    %v494 = vsel %vm490, %v63, 256
    %v495 = vsel %vm491, %v64, 256
    %v496 = vsel %vm492, %v63, 256
    %v497 = vsel %vm493, %v64, 256
    %vm498 = vcmp.lt.s32.totalorder %v494, %v495
    %v499 = vsel %vm498, %v494, %v495
    %v500 = vand.u32 %v499, 65535
    %v501 = vshra.s32 %v499, 16
    %v502 = vcvt.s32.f32 %v500
    %v503 = vcvt.s32.f32 %v501
    %504 = vmin.xlane.f32.xlu0 %v503
    %v505 = vpop.xlane.xlu0 %504
    %vm506 = vcmp.eq.f32.partialorder %v503, %v505
    %v507 = vsel %vm506, %v502, inf
    %508 = vmin.xlane.f32.xlu0 %v507
    %v509 = vpop.xlane.xlu0 %508
    %v510 = vcvt.f32.s32 %v509
    %v511 = vcvt.f32.s32 %v505
    %v512 = vshll.u32 %v511, 16
    %v513 = vadd.s32 %v512, %v510
    %vm514 = vcmp.lt.s32.totalorder %v496, %v497
    %v515 = vsel %vm514, %v496, %v497
    %v516 = vand.u32 %v515, 65535
    %v517 = vshra.s32 %v515, 16
    %v518 = vcvt.s32.f32 %v516
    %v519 = vcvt.s32.f32 %v517
    %520 = vmin.xlane.f32.xlu0 %v519
    %v521 = vpop.xlane.xlu0 %520
    %vm522 = vcmp.eq.f32.partialorder %v519, %v521
    %v523 = vsel %vm522, %v518, inf
    %524 = vmin.xlane.f32.xlu0 %v523
    %v525 = vpop.xlane.xlu0 %524
    %v526 = vcvt.f32.s32 %v525
    %v527 = vcvt.f32.s32 %v521
    %v528 = vshll.u32 %v527, 16
    %v529 = vadd.s32 %v528, %v526
    %vm530 = vcmp.eq.s32.totalorder %v63, %v513
    %vm531 = vcmp.eq.s32.totalorder %v64, %v513
    %vm532 = vcmp.eq.s32.totalorder %v63, %v529
    %vm533 = vcmp.eq.s32.totalorder %v64, %v529
    %v534 = vsel %vm530, 1, 0
    %v535 = vsel %vm531, 1, 0
    %v536 = vsel %vm532, 1, 0
    %v537 = vsel %vm533, 1, 0
    %v538 = vcvt.s32.f32 %v534
    %v539 = vcvt.s32.f32 %v535
    %v540 = vcvt.s32.f32 %v536
    %v541 = vcvt.s32.f32 %v537
    %v546 = vcombine.low %v538, %v539
    %v548 = vunpack.c.l.s4 1966171168
    %v549 = vunpack.c.0.s8 %v548
    %v550 = vlaneseq
    %v551 = vshrl.u32 %v550, 7
    %v552 = vsub.s32 %v549, %v551
    %v553 = vrot.slane %v546, %v552
    %v555 = vunpack.c.l.s4 1966171168
    %v556 = vunpack.c.0.s8 %v555
    %v557 = vlaneseq
    %v558 = vshrl.u32 %v557, 7
    %v559 = vsub.s32 %v556, %v558
    %v560 = vrot.slane %v553, %v559
    %v561 = vcombine.low %v540, %v541
    %v563 = vunpack.c.l.s4 1966171168
    %v564 = vunpack.c.0.s8 %v563
    %v565 = vlaneseq
    %v566 = vshrl.u32 %v565, 7
    %v567 = vsub.s32 %v564, %v566
    %v568 = vrot.slane %v561, %v567
    %v570 = vunpack.c.l.s4 1966171168
    %v571 = vunpack.c.0.s8 %v570
    %v572 = vlaneseq
    %v573 = vshrl.u32 %v572, 7
    %v574 = vsub.s32 %v571, %v573
    %v575 = vrot.slane %v568, %v574
    %s578 = scalar_lea.vmem [#allocation2], 4
    %579 = vst.msk [vmem:[%s578] ss:$8 sm:$0x3] %vm162, %v560
    %580 = vst.msk [vmem:[%s578] ss:$8 sm:$0x0] %vm162, %v560
    %s581 = scalar_lea.vmem [#allocation2], 20
    %582 = vst.msk [vmem:[%s581] ss:$8 sm:$0x3] %vm162, %v575
    %583 = vst.msk [vmem:[%s581] ss:$8 sm:$0x0] %vm162, %v575
    %v584 = vsel %vm530, -inf, %v480
    %v585 = vsel %vm531, -inf, %v481
    %v586 = vsel %vm532, -inf, %v482
    %v587 = vsel %vm533, -inf, %v483
    %v588 = vmax.f32 %v584, %v585
    %589 = vmax.xlane.f32.xlu0 %v588
    %v590 = vpop.xlane.xlu0 %589
    %v591 = vmax.f32 %v586, %v587
    %592 = vmax.xlane.f32.xlu0 %v591
    %v593 = vpop.xlane.xlu0 %592
    %vm594 = vcmp.eq.f32.partialorder %v584, %v590
    %vm595 = vcmp.eq.f32.partialorder %v585, %v590
    %vm596 = vcmp.eq.f32.partialorder %v586, %v593
    %vm597 = vcmp.eq.f32.partialorder %v587, %v593
    %v598 = vsel %vm594, %v63, 256
    %v599 = vsel %vm595, %v64, 256
    %v600 = vsel %vm596, %v63, 256
    %v601 = vsel %vm597, %v64, 256
    %vm602 = vcmp.lt.s32.totalorder %v598, %v599
    %v603 = vsel %vm602, %v598, %v599
    %v604 = vand.u32 %v603, 65535
    %v605 = vshra.s32 %v603, 16
    %v606 = vcvt.s32.f32 %v604
    %v607 = vcvt.s32.f32 %v605
    %608 = vmin.xlane.f32.xlu0 %v607
    %v609 = vpop.xlane.xlu0 %608
    %vm610 = vcmp.eq.f32.partialorder %v607, %v609
    %v611 = vsel %vm610, %v606, inf
    %612 = vmin.xlane.f32.xlu0 %v611
    %v613 = vpop.xlane.xlu0 %612
    %v614 = vcvt.f32.s32 %v613
    %v615 = vcvt.f32.s32 %v609
    %v616 = vshll.u32 %v615, 16
    %v617 = vadd.s32 %v616, %v614
    %vm618 = vcmp.lt.s32.totalorder %v600, %v601
    %v619 = vsel %vm618, %v600, %v601
    %v620 = vand.u32 %v619, 65535
    %v621 = vshra.s32 %v619, 16
    %v622 = vcvt.s32.f32 %v620
    %v623 = vcvt.s32.f32 %v621
    %624 = vmin.xlane.f32.xlu0 %v623
    %v625 = vpop.xlane.xlu0 %624
    %vm626 = vcmp.eq.f32.partialorder %v623, %v625
    %v627 = vsel %vm626, %v622, inf
    %628 = vmin.xlane.f32.xlu0 %v627
    %v629 = vpop.xlane.xlu0 %628
    %v630 = vcvt.f32.s32 %v629
    %v631 = vcvt.f32.s32 %v625
    %v632 = vshll.u32 %v631, 16
    %v633 = vadd.s32 %v632, %v630
    %vm634 = vcmp.eq.s32.totalorder %v63, %v617
    %vm635 = vcmp.eq.s32.totalorder %v64, %v617
    %vm636 = vcmp.eq.s32.totalorder %v63, %v633
    %vm637 = vcmp.eq.s32.totalorder %v64, %v633
    %v638 = vsel %vm634, 1, 0
    %v639 = vsel %vm635, 1, 0
    %v640 = vsel %vm636, 1, 0
    %v641 = vsel %vm637, 1, 0
    %v642 = vcvt.s32.f32 %v638
    %v643 = vcvt.s32.f32 %v639
    %v644 = vcvt.s32.f32 %v640
    %v645 = vcvt.s32.f32 %v641
    %v650 = vcombine.low %v642, %v643
    %v652 = vunpack.c.l.s4 1966171168
    %v653 = vunpack.c.0.s8 %v652
    %v654 = vlaneseq
    %v655 = vshrl.u32 %v654, 7
    %v656 = vsub.s32 %v653, %v655
    %v657 = vrot.slane %v650, %v656
    %v659 = vunpack.c.l.s4 1966171168
    %v660 = vunpack.c.0.s8 %v659
    %v661 = vlaneseq
    %v662 = vshrl.u32 %v661, 7
    %v663 = vsub.s32 %v660, %v662
    %v664 = vrot.slane %v657, %v663
    %v665 = vcombine.low %v644, %v645
    %v667 = vunpack.c.l.s4 1966171168
    %v668 = vunpack.c.0.s8 %v667
    %v669 = vlaneseq
    %v670 = vshrl.u32 %v669, 7
    %v671 = vsub.s32 %v668, %v670
    %v672 = vrot.slane %v665, %v671
    %v674 = vunpack.c.l.s4 1966171168
    %v675 = vunpack.c.0.s8 %v674
    %v676 = vlaneseq
    %v677 = vshrl.u32 %v676, 7
    %v678 = vsub.s32 %v675, %v677
    %v679 = vrot.slane %v672, %v678
    %s682 = scalar_lea.vmem [#allocation2], 5
    %683 = vst.msk [vmem:[%s682] ss:$8 sm:$0x3] %vm162, %v664
    %684 = vst.msk [vmem:[%s682] ss:$8 sm:$0x0] %vm162, %v664
    %s685 = scalar_lea.vmem [#allocation2], 21
    %686 = vst.msk [vmem:[%s685] ss:$8 sm:$0x3] %vm162, %v679
    %687 = vst.msk [vmem:[%s685] ss:$8 sm:$0x0] %vm162, %v679
    %v688 = vsel %vm634, -inf, %v584
    %v689 = vsel %vm635, -inf, %v585
    %v690 = vsel %vm636, -inf, %v586
    %v691 = vsel %vm637, -inf, %v587
    %v692 = vmax.f32 %v688, %v689
    %693 = vmax.xlane.f32.xlu0 %v692
    %v694 = vpop.xlane.xlu0 %693
    %v695 = vmax.f32 %v690, %v691
    %696 = vmax.xlane.f32.xlu0 %v695
    %v697 = vpop.xlane.xlu0 %696
    %vm698 = vcmp.eq.f32.partialorder %v688, %v694
    %vm699 = vcmp.eq.f32.partialorder %v689, %v694
    %vm700 = vcmp.eq.f32.partialorder %v690, %v697
    %vm701 = vcmp.eq.f32.partialorder %v691, %v697
    %v702 = vsel %vm698, %v63, 256
    %v703 = vsel %vm699, %v64, 256
    %v704 = vsel %vm700, %v63, 256
    %v705 = vsel %vm701, %v64, 256
    %vm706 = vcmp.lt.s32.totalorder %v702, %v703
    %v707 = vsel %vm706, %v702, %v703
    %v708 = vand.u32 %v707, 65535
    %v709 = vshra.s32 %v707, 16
    %v710 = vcvt.s32.f32 %v708
    %v711 = vcvt.s32.f32 %v709
    %712 = vmin.xlane.f32.xlu0 %v711
    %v713 = vpop.xlane.xlu0 %712
    %vm714 = vcmp.eq.f32.partialorder %v711, %v713
    %v715 = vsel %vm714, %v710, inf
    %716 = vmin.xlane.f32.xlu0 %v715
    %v717 = vpop.xlane.xlu0 %716
    %v718 = vcvt.f32.s32 %v717
    %v719 = vcvt.f32.s32 %v713
    %v720 = vshll.u32 %v719, 16
    %v721 = vadd.s32 %v720, %v718
    %vm722 = vcmp.lt.s32.totalorder %v704, %v705
    %v723 = vsel %vm722, %v704, %v705
    %v724 = vand.u32 %v723, 65535
    %v725 = vshra.s32 %v723, 16
    %v726 = vcvt.s32.f32 %v724
    %v727 = vcvt.s32.f32 %v725
    %728 = vmin.xlane.f32.xlu0 %v727
    %v729 = vpop.xlane.xlu0 %728
    %vm730 = vcmp.eq.f32.partialorder %v727, %v729
    %v731 = vsel %vm730, %v726, inf
    %732 = vmin.xlane.f32.xlu0 %v731
    %v733 = vpop.xlane.xlu0 %732
    %v734 = vcvt.f32.s32 %v733
    %v735 = vcvt.f32.s32 %v729
    %v736 = vshll.u32 %v735, 16
    %v737 = vadd.s32 %v736, %v734
    %vm738 = vcmp.eq.s32.totalorder %v63, %v721
    %vm739 = vcmp.eq.s32.totalorder %v64, %v721
    %vm740 = vcmp.eq.s32.totalorder %v63, %v737
    %vm741 = vcmp.eq.s32.totalorder %v64, %v737
    %v742 = vsel %vm738, 1, 0
    %v743 = vsel %vm739, 1, 0
    %v744 = vsel %vm740, 1, 0
    %v745 = vsel %vm741, 1, 0
    %v746 = vcvt.s32.f32 %v742
    %v747 = vcvt.s32.f32 %v743
    %v748 = vcvt.s32.f32 %v744
    %v749 = vcvt.s32.f32 %v745
    %v754 = vcombine.low %v746, %v747
    %v756 = vunpack.c.l.s4 1966171168
    %v757 = vunpack.c.0.s8 %v756
    %v758 = vlaneseq
    %v759 = vshrl.u32 %v758, 7
    %v760 = vsub.s32 %v757, %v759
    %v761 = vrot.slane %v754, %v760
    %v763 = vunpack.c.l.s4 1966171168
    %v764 = vunpack.c.0.s8 %v763
    %v765 = vlaneseq
    %v766 = vshrl.u32 %v765, 7
    %v767 = vsub.s32 %v764, %v766
    %v768 = vrot.slane %v761, %v767
    %v769 = vcombine.low %v748, %v749
    %v771 = vunpack.c.l.s4 1966171168
    %v772 = vunpack.c.0.s8 %v771
    %v773 = vlaneseq
    %v774 = vshrl.u32 %v773, 7
    %v775 = vsub.s32 %v772, %v774
    %v776 = vrot.slane %v769, %v775
    %v778 = vunpack.c.l.s4 1966171168
    %v779 = vunpack.c.0.s8 %v778
    %v780 = vlaneseq
    %v781 = vshrl.u32 %v780, 7
    %v782 = vsub.s32 %v779, %v781
    %v783 = vrot.slane %v776, %v782
    %s786 = scalar_lea.vmem [#allocation2], 6
    %787 = vst.msk [vmem:[%s786] ss:$8 sm:$0x3] %vm162, %v768
    %788 = vst.msk [vmem:[%s786] ss:$8 sm:$0x0] %vm162, %v768
    %s789 = scalar_lea.vmem [#allocation2], 22
    %790 = vst.msk [vmem:[%s789] ss:$8 sm:$0x3] %vm162, %v783
    %791 = vst.msk [vmem:[%s789] ss:$8 sm:$0x0] %vm162, %v783
    %v792 = vsel %vm738, -inf, %v688
    %v793 = vsel %vm739, -inf, %v689
    %v794 = vsel %vm740, -inf, %v690
    %v795 = vsel %vm741, -inf, %v691
    %v796 = vmax.f32 %v792, %v793
    %797 = vmax.xlane.f32.xlu0 %v796
    %v798 = vpop.xlane.xlu0 %797
    %v799 = vmax.f32 %v794, %v795
    %800 = vmax.xlane.f32.xlu0 %v799
    %v801 = vpop.xlane.xlu0 %800
    %vm802 = vcmp.eq.f32.partialorder %v792, %v798
    %vm803 = vcmp.eq.f32.partialorder %v793, %v798
    %vm804 = vcmp.eq.f32.partialorder %v794, %v801
    %vm805 = vcmp.eq.f32.partialorder %v795, %v801
    %v806 = vsel %vm802, %v63, 256
    %v807 = vsel %vm803, %v64, 256
    %v808 = vsel %vm804, %v63, 256
    %v809 = vsel %vm805, %v64, 256
    %vm810 = vcmp.lt.s32.totalorder %v806, %v807
    %v811 = vsel %vm810, %v806, %v807
    %v812 = vand.u32 %v811, 65535
    %v813 = vshra.s32 %v811, 16
    %v814 = vcvt.s32.f32 %v812
    %v815 = vcvt.s32.f32 %v813
    %816 = vmin.xlane.f32.xlu0 %v815
    %v817 = vpop.xlane.xlu0 %816
    %vm818 = vcmp.eq.f32.partialorder %v815, %v817
    %v819 = vsel %vm818, %v814, inf
    %820 = vmin.xlane.f32.xlu0 %v819
    %v821 = vpop.xlane.xlu0 %820
    %v822 = vcvt.f32.s32 %v821
    %v823 = vcvt.f32.s32 %v817
    %v824 = vshll.u32 %v823, 16
    %v825 = vadd.s32 %v824, %v822
    %vm826 = vcmp.lt.s32.totalorder %v808, %v809
    %v827 = vsel %vm826, %v808, %v809
    %v828 = vand.u32 %v827, 65535
    %v829 = vshra.s32 %v827, 16
    %v830 = vcvt.s32.f32 %v828
    %v831 = vcvt.s32.f32 %v829
    %832 = vmin.xlane.f32.xlu0 %v831
    %v833 = vpop.xlane.xlu0 %832
    %vm834 = vcmp.eq.f32.partialorder %v831, %v833
    %v835 = vsel %vm834, %v830, inf
    %836 = vmin.xlane.f32.xlu0 %v835
    %v837 = vpop.xlane.xlu0 %836
    %v838 = vcvt.f32.s32 %v837
    %v839 = vcvt.f32.s32 %v833
    %v840 = vshll.u32 %v839, 16
    %v841 = vadd.s32 %v840, %v838
    %vm842 = vcmp.eq.s32.totalorder %v63, %v825
    %vm843 = vcmp.eq.s32.totalorder %v64, %v825
    %vm844 = vcmp.eq.s32.totalorder %v63, %v841
    %vm845 = vcmp.eq.s32.totalorder %v64, %v841
    %v846 = vsel %vm842, 1, 0
    %v847 = vsel %vm843, 1, 0
    %v848 = vsel %vm844, 1, 0
    %v849 = vsel %vm845, 1, 0
    %v850 = vcvt.s32.f32 %v846
    %v851 = vcvt.s32.f32 %v847
    %v852 = vcvt.s32.f32 %v848
    %v853 = vcvt.s32.f32 %v849
    %v858 = vcombine.low %v850, %v851
    %v860 = vunpack.c.l.s4 1966171168
    %v861 = vunpack.c.0.s8 %v860
    %v862 = vlaneseq
    %v863 = vshrl.u32 %v862, 7
    %v864 = vsub.s32 %v861, %v863
    %v865 = vrot.slane %v858, %v864
    %v867 = vunpack.c.l.s4 1966171168
    %v868 = vunpack.c.0.s8 %v867
    %v869 = vlaneseq
    %v870 = vshrl.u32 %v869, 7
    %v871 = vsub.s32 %v868, %v870
    %v872 = vrot.slane %v865, %v871
    %v873 = vcombine.low %v852, %v853
    %v875 = vunpack.c.l.s4 1966171168
    %v876 = vunpack.c.0.s8 %v875
    %v877 = vlaneseq
    %v878 = vshrl.u32 %v877, 7
    %v879 = vsub.s32 %v876, %v878
    %v880 = vrot.slane %v873, %v879
    %v882 = vunpack.c.l.s4 1966171168
    %v883 = vunpack.c.0.s8 %v882
    %v884 = vlaneseq
    %v885 = vshrl.u32 %v884, 7
    %v886 = vsub.s32 %v883, %v885
    %v887 = vrot.slane %v880, %v886
    %s890 = scalar_lea.vmem [#allocation2], 7
    %891 = vst.msk [vmem:[%s890] ss:$8 sm:$0x3] %vm162, %v872
    %892 = vst.msk [vmem:[%s890] ss:$8 sm:$0x0] %vm162, %v872
    %s893 = scalar_lea.vmem [#allocation2], 23
    %894 = vst.msk [vmem:[%s893] ss:$8 sm:$0x3] %vm162, %v887
    %895 = vst.msk [vmem:[%s893] ss:$8 sm:$0x0] %vm162, %v887
    %v896 = vld [vmem:[#allocation3] sm:$0xff]
    %v897 = vld [vmem:[#allocation3 + $0x8] sm:$0xff]
    %v898 = vld [vmem:[#allocation2] sm:$0xff]
    %v899 = vld [vmem:[#allocation2 + $0x8] sm:$0xff]
    %v900 = vld [vmem:[#allocation2 + $0x10] sm:$0xff]
    %v901 = vld [vmem:[#allocation2 + $0x18] sm:$0xff]
    %v903 = vcombine.high %v896, %v896
    %905 = vmatprep.subr.mxu0 %v899
    %906 = vmatpush1.xpose.msra.mxu0 %v898
    %907 = vmatprep.subr.mxu0 0.0
    %908 = vmatpush1.xpose.msra.mxu0 0.0
    %909 = vmatprep.subr.mxu0 0.0
    %910 = vmatpush1.xpose.msra.mxu0 0.0
    %911 = vmatprep.subr.mxu0 0.0
    %912 = vmatpush1.xpose.msra.mxu0 0.0
    %913 = vmatprep.subr.mxu0 0.0
    %914 = vmatpush1.xpose.msra.mxu0 0.0
    %915 = vmatprep.subr.mxu0 0.0
    %916 = vmatpush1.xpose.msra.mxu0 0.0
    %917 = vmatprep.subr.mxu0 0.0
    %918 = vmatpush1.xpose.msra.mxu0 0.0
    %919 = vmatprep.subr.mxu0 0.0
    %920 = vmatpush1.xpose.msra.mxu0 0.0
    %921 = vmatprep.subr.mxu0 0.0
    %922 = vmatpush1.xpose.msra.mxu0 0.0
    %923 = vmatprep.subr.mxu0 0.0
    %924 = vmatpush1.xpose.msra.mxu0 0.0
    %925 = vmatprep.subr.mxu0 0.0
    %926 = vmatpush1.xpose.msra.mxu0 0.0
    %927 = vmatprep.subr.mxu0 0.0
    %928 = vmatpush1.xpose.msra.mxu0 0.0
    %929 = vmatprep.subr.mxu0 0.0
    %930 = vmatpush1.xpose.msra.mxu0 0.0
    %931 = vmatprep.subr.mxu0 0.0
    %932 = vmatpush1.xpose.msra.mxu0 0.0
    %933 = vmatprep.subr.mxu0 0.0
    %934 = vmatpush1.xpose.msra.mxu0 0.0
    %935 = vmatprep.subr.mxu0 0.0
    %936 = vmatpush1.xpose.msra.mxu0 0.0
    %937 = vmatprep.subr.mxu0 0.0
    %938 = vmatpush1.xpose.msra.mxu0 0.0
    %939 = vmatprep.subr.mxu0 0.0
    %940 = vmatpush1.xpose.msra.mxu0 0.0
    %941 = vmatprep.subr.mxu0 0.0
    %942 = vmatpush1.xpose.msra.mxu0 0.0
    %943 = vmatprep.subr.mxu0 0.0
    %944 = vmatpush1.xpose.msra.mxu0 0.0
    %945 = vmatprep.subr.mxu0 0.0
    %946 = vmatpush1.xpose.msra.mxu0 0.0
    %947 = vmatprep.subr.mxu0 0.0
    %948 = vmatpush1.xpose.msra.mxu0 0.0
    %949 = vmatprep.subr.mxu0 0.0
    %950 = vmatpush1.xpose.msra.mxu0 0.0
    %951 = vmatprep.subr.mxu0 0.0
    %952 = vmatpush1.xpose.msra.mxu0 0.0
    %953 = vmatprep.subr.mxu0 0.0
    %954 = vmatpush1.xpose.msra.mxu0 0.0
    %955 = vmatprep.subr.mxu0 0.0
    %956 = vmatpush1.xpose.msra.mxu0 0.0
    %957 = vmatprep.subr.mxu0 0.0
    %958 = vmatpush1.xpose.msra.mxu0 0.0
    %959 = vmatprep.subr.mxu0 0.0
    %960 = vmatpush1.xpose.msra.mxu0 0.0
    %961 = vmatprep.subr.mxu0 0.0
    %962 = vmatpush1.xpose.msra.mxu0 0.0
    %963 = vmatprep.subr.mxu0 0.0
    %964 = vmatpush1.xpose.msra.mxu0 0.0
    %965 = vmatprep.subr.mxu0 0.0
    %966 = vmatpush1.xpose.msra.mxu0 0.0
    %967 = vmatprep.subr.mxu0 0.0
    %968 = vmatpush1.xpose.msra.mxu0 0.0
    %969 = vmatprep.mubr.f32.mxu0 %v903
    %970 = vmatmul.mubr.f32.gmra.mrb[0].mxu0 %v896
    %v971 = vpop.f32.mrb[0].mxu0
    %v972 = vadd.f32 0.0, %v971
    %v973 = vpop.f32.mrb[0].mxu0
    %974 = vdwg.mxu0
    %v976 = vcombine.high %v897, %v897
    %978 = vmatprep.subr.mxu0 %v901
    %979 = vmatpush1.xpose.msra.mxu0 %v900
    %980 = vmatprep.subr.mxu0 0.0
    %981 = vmatpush1.xpose.msra.mxu0 0.0
    %982 = vmatprep.subr.mxu0 0.0
    %983 = vmatpush1.xpose.msra.mxu0 0.0
    %984 = vmatprep.subr.mxu0 0.0
    %985 = vmatpush1.xpose.msra.mxu0 0.0
    %986 = vmatprep.subr.mxu0 0.0
    %987 = vmatpush1.xpose.msra.mxu0 0.0
    %988 = vmatprep.subr.mxu0 0.0
    %989 = vmatpush1.xpose.msra.mxu0 0.0
    %990 = vmatprep.subr.mxu0 0.0
    %991 = vmatpush1.xpose.msra.mxu0 0.0
    %992 = vmatprep.subr.mxu0 0.0
    %993 = vmatpush1.xpose.msra.mxu0 0.0
    %994 = vmatprep.subr.mxu0 0.0
    %995 = vmatpush1.xpose.msra.mxu0 0.0
    %996 = vmatprep.subr.mxu0 0.0
    %997 = vmatpush1.xpose.msra.mxu0 0.0
    %998 = vmatprep.subr.mxu0 0.0
    %999 = vmatpush1.xpose.msra.mxu0 0.0
    %1000 = vmatprep.subr.mxu0 0.0
    %1001 = vmatpush1.xpose.msra.mxu0 0.0
    %1002 = vmatprep.subr.mxu0 0.0
    %1003 = vmatpush1.xpose.msra.mxu0 0.0
    %1004 = vmatprep.subr.mxu0 0.0
    %1005 = vmatpush1.xpose.msra.mxu0 0.0
    %1006 = vmatprep.subr.mxu0 0.0
    %1007 = vmatpush1.xpose.msra.mxu0 0.0
    %1008 = vmatprep.subr.mxu0 0.0
    %1009 = vmatpush1.xpose.msra.mxu0 0.0
    %1010 = vmatprep.subr.mxu0 0.0
    %1011 = vmatpush1.xpose.msra.mxu0 0.0
    %1012 = vmatprep.subr.mxu0 0.0
    %1013 = vmatpush1.xpose.msra.mxu0 0.0
    %1014 = vmatprep.subr.mxu0 0.0
    %1015 = vmatpush1.xpose.msra.mxu0 0.0
    %1016 = vmatprep.subr.mxu0 0.0
    %1017 = vmatpush1.xpose.msra.mxu0 0.0
    %1018 = vmatprep.subr.mxu0 0.0
    %1019 = vmatpush1.xpose.msra.mxu0 0.0
    %1020 = vmatprep.subr.mxu0 0.0
    %1021 = vmatpush1.xpose.msra.mxu0 0.0
    %1022 = vmatprep.subr.mxu0 0.0
    %1023 = vmatpush1.xpose.msra.mxu0 0.0
    %1024 = vmatprep.subr.mxu0 0.0
    %1025 = vmatpush1.xpose.msra.mxu0 0.0
    %1026 = vmatprep.subr.mxu0 0.0
    %1027 = vmatpush1.xpose.msra.mxu0 0.0
    %1028 = vmatprep.subr.mxu0 0.0
    %1029 = vmatpush1.xpose.msra.mxu0 0.0
    %1030 = vmatprep.subr.mxu0 0.0
    %1031 = vmatpush1.xpose.msra.mxu0 0.0
    %1032 = vmatprep.subr.mxu0 0.0
    %1033 = vmatpush1.xpose.msra.mxu0 0.0
    %1034 = vmatprep.subr.mxu0 0.0
    %1035 = vmatpush1.xpose.msra.mxu0 0.0
    %1036 = vmatprep.subr.mxu0 0.0
    %1037 = vmatpush1.xpose.msra.mxu0 0.0
    %1038 = vmatprep.subr.mxu0 0.0
    %1039 = vmatpush1.xpose.msra.mxu0 0.0
    %1040 = vmatprep.subr.mxu0 0.0
    %1041 = vmatpush1.xpose.msra.mxu0 0.0
    %1042 = vmatprep.mubr.f32.mxu0 %v976
    %1043 = vmatmul.mubr.f32.gmra.mrb[0].mxu0 %v897
    %v1044 = vpop.f32.mrb[0].mxu0
    %v1045 = vadd.f32 0.0, %v1044
    %v1046 = vpop.f32.mrb[0].mxu0
    %1047 = vdwg.mxu0
    %vm1048 = vcmask 60416
    %1049 = vst.msk [vmem:[#allocation6] sm:$0xf] %vm1048, %v972
    %1050 = vst.msk [vmem:[#allocation6 + $0x4] sm:$0xf] %vm1048, %v1045
    // Predicated region
    $region10: #{tpu_custom_call.1} parent=1 // pred_check
      _
    $region11: #{tpu_custom_call.1} parent=1 // pred_check_branch
      %1052 = sbr.rel (0) target = $region13
    $region12: #{tpu_custom_call.1} parent=1 // pred_region
      %s1054 = ssub.s32 128, 128
      %1055 = vsyncadd [#allocation5], %s1054
      %s1056 = sshll.u32 [#allocation6], 4
      %s1057 = int_to_ptr.vmem [resolvable:$true] %s1056
      %1062 = dma.vmem_to_hbm [thread:$0]  %s1057, 128, %s1, [#allocation5], 64, 64, 4
    $region13: #{tpu_custom_call.1} parent=1 // pred_fallthru
      _
    // Predicated region
    $region14: #{tpu_custom_call.1} parent=1 // pred_check
      _
    $region15: #{tpu_custom_call.1} parent=1 // pred_check_branch
      %1064 = sbr.rel (0) target = $region17
    $region16: #{tpu_custom_call.1} parent=1 // pred_region
      %1065 = dma.done [#allocation5], 128
    $region17: #{tpu_custom_call.1} parent=1 // pred_fallthru
      _
    %1066 = vsyncpa [#allocation4], 1
    %1067 = vsyncpa [#allocation5], 1

</llo_original>
